<compile_context>
chip_gen: v7x
topology: tpu7x:2x2x1
jax: 0.10.0
libtpu: 0.0.40
codegen_flags: <defaults>
</compile_context>

<pallas_src>
import jax
import jax.numpy as jnp
from jax.experimental import pallas as pl
from jax.experimental.pallas import tpu as pltpu


H = 128            # lane-dense hidden/output width (real widths 64 / 64 / 2 are zero-padded)
BIAS_COL = 64      # column that carries the constant 1.0 used to apply biases
P_ROWS = 8 + H + H # packed parameter blob rows: W1a(8,128) | W2a(128,128) | W3a(128,128)


def qnet_kernel(x_ref, p_ref, q_ref, act_ref):
    # x_ref : (TILE_B, 8)    -- obs(4) | 1.0 | zeros(3)
    # p_ref : (264, 128)     -- packed, bias-augmented weights (VMEM-resident)
    # q_ref : (TILE_B, 128)  -- Q-values in lanes 0..1, zeros elsewhere
    # act_ref:(TILE_B, 128)  -- fused argmax action, broadcast across lanes
    x = x_ref[...]

    w1 = p_ref[0:8, :]                 # (8,   128)  rows 0..3 = W1, row 4 = b1 (+ 1-carry)
    w2 = p_ref[8:136, :]               # (128, 128)  rows 0..63 = W2, row 64 = b2 (+ 1-carry)
    w3 = p_ref[136:264, :]             # (128, 128)  rows 0..63 = W3, row 64 = b3

    h = jnp.maximum(jnp.dot(x, w1, preferred_element_type=jnp.float32), 0.0)
    h = jnp.maximum(jnp.dot(h, w2, preferred_element_type=jnp.float32), 0.0)
    q = jnp.dot(h, w3, preferred_element_type=jnp.float32)   # (TILE_B, 128), f32

    q_ref[...] = q                                            # lane-dense unmasked store

    # Fused sample_action: argmax over the 2 real Q-values (ties -> action 0,
    # matching torch.argmax first-max semantics). Broadcast so the store is
    # 128 lanes wide as well.
    a = (q[:, 1:2] > q[:, 0:1]).astype(jnp.int32)             # (TILE_B, 1)
    act_ref[...] = jnp.broadcast_to(a, act_ref.shape)


def _round_up(n, m):
    return ((n + m - 1) // m) * m


def qnet_forward(x, packed_params, *, tile_b=256, return_action=False):
    """x: (B, 4) float32 observations.  Returns Q-values (B, 2) [and actions (B,)]."""
    B = x.shape[0]
    tile = min(tile_b, _round_up(B, 8))        # MXU-friendly tile (256 on v6e/v7x at large B)
    b_pad = _round_up(B, tile)

    # Augment obs with the constant-1 column (bias carrier) and pad to 8 lanes / b_pad rows.
    x8 = jnp.concatenate(
        [x.astype(jnp.float32),
         jnp.ones((B, 1), jnp.float32),
         jnp.zeros((B, 3), jnp.float32)], axis=1)
    x8 = jnp.pad(x8, ((0, b_pad - B), (0, 0)))

    q_pad, act_pad = pl.pallas_call(
        qnet_kernel,
        out_shape=(jax.ShapeDtypeStruct((b_pad, H), jnp.float32),
                   jax.ShapeDtypeStruct((b_pad, H), jnp.int32)),
        grid=(b_pad // tile,),
        in_specs=[
            pl.BlockSpec((tile, 8), lambda i: (i, 0)),        # activations: streamed per tile
            pl.BlockSpec((P_ROWS, H), lambda i: (0, 0)),      # params: pinned in VMEM
        ],
        out_specs=(
            pl.BlockSpec((tile, H), lambda i: (i, 0)),
            pl.BlockSpec((tile, H), lambda i: (i, 0)),
        ),
        compiler_params=pltpu.CompilerParams(
            dimension_semantics=("parallel",)),               # shard batch tiles across TCs (v7x)
    )(x8, packed_params)

    q = q_pad[:B, :2]
    if return_action:
        return q, act_pad[:B, 0]
    return q


def sample_action(obs, packed_params):
    """Equivalent of Qnet.sample_action for a single observation (greedy part)."""
    _, act = qnet_forward(obs.reshape(1, -1), packed_params, return_action=True)
    return int(act[0])


def init_linear(key, in_f, out_f):
    # PyTorch nn.Linear default init: U(-1/sqrt(in_f), 1/sqrt(in_f)).
    kw, kb = jax.random.split(key)
    bound = 1.0 / (in_f ** 0.5)
    w = jax.random.uniform(kw, (in_f, out_f), jnp.float32, -bound, bound)  # stored (in, out)
    b = jax.random.uniform(kb, (out_f,), jnp.float32, -bound, bound)
    return w, b


def init_qnet_params(key):
    k1, k2, k3 = jax.random.split(key, 3)
    w1, b1 = init_linear(k1, 4, 64)
    w2, b2 = init_linear(k2, 64, 64)
    w3, b3 = init_linear(k3, 64, 2)
    return (w1, b1, w2, b2, w3, b3)


def pack_qnet_params(params):
    """Fold biases into bias-augmented, lane-padded weights and stack into one blob.

    The constant 1.0 injected as x[:, 4] flows through column BIAS_COL of every
    hidden layer (W1a[4, 64] = 1, W2a[64, 64] = 1, ReLU(1) = 1), so row 4 / 64
    of each augmented matrix applies the layer's bias exactly.
    """
    w1, b1, w2, b2, w3, b3 = params

    w1a = jnp.zeros((8, H), jnp.float32)
    w1a = w1a.at[0:4, 0:64].set(w1)
    w1a = w1a.at[4, 0:64].set(b1)
    w1a = w1a.at[4, BIAS_COL].set(1.0)

    w2a = jnp.zeros((H, H), jnp.float32)
    w2a = w2a.at[0:64, 0:64].set(w2)
    w2a = w2a.at[BIAS_COL, 0:64].set(b2)
    w2a = w2a.at[BIAS_COL, BIAS_COL].set(1.0)

    w3a = jnp.zeros((H, H), jnp.float32)
    w3a = w3a.at[0:64, 0:2].set(w3)
    w3a = w3a.at[BIAS_COL, 0:2].set(b3)

    return jnp.concatenate([w1a, w2a, w3a], axis=0)  # (264, 128)


def qnet_reference(x, params):
    w1, b1, w2, b2, w3, b3 = params
    h = jnp.maximum(x @ w1 + b1, 0.0)
    h = jnp.maximum(h @ w2 + b2, 0.0)
    return h @ w3 + b3


# TODO(synk): the replay buffer / epsilon-greedy exploration / training loop in
# agent_2.py are host-side control flow and are intentionally not kernelized.

if __name__ == "__main__":
    key = jax.random.PRNGKey(0)
    kx, kp = jax.random.split(key)

    batch = 8
    x = jax.random.normal(kx, (batch, 4), dtype=jnp.float32)   # CartPole-like obs
    params = init_qnet_params(kp)
    packed = pack_qnet_params(params)

    q, act = qnet_forward(x, packed, return_action=True)
    q = jax.block_until_ready(q)
    act = jax.block_until_ready(act)

    ref = qnet_reference(x, params)
    assert q.shape == (batch, 2), q.shape
    assert jnp.allclose(q, ref, atol=2e-5, rtol=2e-5), (q, ref)
    # Fused action must equal argmax of the kernel's own Q-values (ties -> 0).
    assert jnp.array_equal(act, jnp.argmax(q, axis=1).astype(jnp.int32)), (act, q)

    # sample_action equivalent on a single observation.
    _ = sample_action(x[0], packed)

    print("KERNEL_OK")
</pallas_src>

<mosaic_0001>
module attributes {stable_mosaic.version = 11 : i64} {
  func.func @qnet_kernel(%arg0: i32, %arg1: memref<8x8xf32, #tpu.memory_space<vmem>>, %arg2: memref<264x128xf32, #tpu.memory_space<vmem>>, %arg3: memref<8x128xf32, #tpu.memory_space<vmem>>, %arg4: memref<8x128xi32, #tpu.memory_space<vmem>>) attributes {dimension_semantics = [#tpu.dimension_semantics<parallel>], iteration_bounds = array<i64: 1>, scalar_prefetch = 0 : i64, scratch_operands = 0 : i64, tpu.core_type = #tpu.core_type<tc>, window_params = [{transform_indices = @transform_0, window_bounds = array<i64: 8, 8>}, {pipeline_mode = #tpu.pipeline_mode<synchronous>, transform_indices = @transform_1, window_bounds = array<i64: 264, 128>}, {transform_indices = @transform_2, window_bounds = array<i64: 8, 128>}, {transform_indices = @transform_3, window_bounds = array<i64: 8, 128>}]} {
    %c0 = arith.constant 0 : index
    %c0_0 = arith.constant 0 : index
    %0 = vector.load %arg1[%c0, %c0_0] : memref<8x8xf32, #tpu.memory_space<vmem>>, vector<8x8xf32>
    %c0_1 = arith.constant 0 : index
    %c0_2 = arith.constant 0 : index
    %1 = vector.load %arg2[%c0_1, %c0_2] : memref<264x128xf32, #tpu.memory_space<vmem>>, vector<8x128xf32>
    %c8 = arith.constant 8 : index
    %c0_3 = arith.constant 0 : index
    %2 = vector.load %arg2[%c8, %c0_3] : memref<264x128xf32, #tpu.memory_space<vmem>>, vector<128x128xf32>
    %c136 = arith.constant 136 : index
    %c0_4 = arith.constant 0 : index
    %3 = vector.load %arg2[%c136, %c0_4] : memref<264x128xf32, #tpu.memory_space<vmem>>, vector<128x128xf32>
    %cst = arith.constant dense<0.000000e+00> : vector<8x128xf32>
    %4 = tpu.matmul %0, %1, %cst {dimension_numbers = #tpu.dot_dimension_numbers<[1], [0], [0], [1], [0, 0, 1, 1], [], []>} : vector<8x8xf32>, vector<8x128xf32>, vector<8x128xf32> -> vector<8x128xf32>
    %cst_5 = arith.constant 0.000000e+00 : f32
    %5 = vector.broadcast %cst_5 : f32 to vector<8x128xf32>
    %6 = arith.maximumf %4, %5 : vector<8x128xf32>
    %cst_6 = arith.constant dense<0.000000e+00> : vector<8x128xf32>
    %7 = tpu.matmul %6, %2, %cst_6 {dimension_numbers = #tpu.dot_dimension_numbers<[1], [0], [0], [1], [0, 0, 1, 1], [], []>} : vector<8x128xf32>, vector<128x128xf32>, vector<8x128xf32> -> vector<8x128xf32>
    %cst_7 = arith.constant 0.000000e+00 : f32
    %8 = vector.broadcast %cst_7 : f32 to vector<8x128xf32>
    %9 = arith.maximumf %7, %8 : vector<8x128xf32>
    %cst_8 = arith.constant dense<0.000000e+00> : vector<8x128xf32>
    %10 = tpu.matmul %9, %3, %cst_8 {dimension_numbers = #tpu.dot_dimension_numbers<[1], [0], [0], [1], [0, 0, 1, 1], [], []>} : vector<8x128xf32>, vector<128x128xf32>, vector<8x128xf32> -> vector<8x128xf32>
    %c0_9 = arith.constant 0 : index
    %c0_10 = arith.constant 0 : index
    %11 = vector.load %arg3[%c0_9, %c0_10] : memref<8x128xf32, #tpu.memory_space<vmem>>, vector<8x128xf32>
    tpu.vector_store %arg3[%c0_9, %c0_10], %10 {strides = array<i32>} : memref<8x128xf32, #tpu.memory_space<vmem>>, vector<8x128xf32>,
    %12 = vector.extract_strided_slice %10 {offsets = [0, 1], sizes = [8, 1], strides = [1, 1]} : vector<8x128xf32> to vector<8x1xf32>
    %13 = vector.extract_strided_slice %10 {offsets = [0, 0], sizes = [8, 1], strides = [1, 1]} : vector<8x128xf32> to vector<8x1xf32>
    %14 = arith.cmpf ogt, %12, %13 : vector<8x1xf32>
    %15 = arith.extui %14 : vector<8x1xi1> to vector<8x1xi32>
    %16 = vector.shape_cast %15 : vector<8x1xi32> to vector<8x1xi32>
    %17 = vector.broadcast %16 : vector<8x1xi32> to vector<8x128xi32>
    %c0_11 = arith.constant 0 : index
    %c0_12 = arith.constant 0 : index
    %18 = vector.load %arg4[%c0_11, %c0_12] : memref<8x128xi32, #tpu.memory_space<vmem>>, vector<8x128xi32>
    tpu.vector_store %arg4[%c0_11, %c0_12], %17 {strides = array<i32>} : memref<8x128xi32, #tpu.memory_space<vmem>>, vector<8x128xi32>,
    return
  }
  func.func @transform_0(%arg0: i32) -> (i32, i32) {
    %c0_i32 = arith.constant 0 : i32
    %c0_i32_0 = arith.constant 0 : i32
    return %arg0, %c0_i32 : i32, i32
  }
  func.func @transform_1(%arg0: i32) -> (i32, i32) {
    %c0_i32 = arith.constant 0 : i32
    %c0_i32_0 = arith.constant 0 : i32
    %c0_i32_1 = arith.constant 0 : i32
    return %c0_i32, %c0_i32_0 : i32, i32
  }
  func.func @transform_2(%arg0: i32) -> (i32, i32) {
    %c0_i32 = arith.constant 0 : i32
    %c0_i32_0 = arith.constant 0 : i32
    return %arg0, %c0_i32 : i32, i32
  }
  func.func @transform_3(%arg0: i32) -> (i32, i32) {
    %c0_i32 = arith.constant 0 : i32
    %c0_i32_0 = arith.constant 0 : i32
    return %arg0, %c0_i32 : i32, i32
  }
}

</mosaic_0001>

<llo_original>
// kernel: tpu_custom_call.1
$region0: #{tpu_custom_call.1}
  #allocation0 [shape = 'u32[]', space=smem, size = 0x4, offset = 0x4, fixed_abs, tag = 'smem constant byte address 0x4 - core index']
  #allocation1 [shape = 'u32[144,128]{1,0:T(1,128)}', space=vmem, size = 0x12000, scoped, tag = 'internal scratch']
  %s0 = inlined_call_operand.hbm [shape: f32[8,8], index: 0, kind: input, shape index: {}]
  %s1 = inlined_call_operand.hbm [shape: f32[264,128], index: 1, kind: input, shape index: {}]
  %s2 = inlined_call_operand.hbm [shape: f32[8,128], index: 2, kind: output, shape index: {0}]
  %s3 = inlined_call_operand.hbm [shape: s32[8,128], index: 3, kind: output, shape index: {1}]
  %4 = xla_tuple %s2, %s3
  %s5 = sld [smem:[#allocation0]]
  $region34: #{tpu_custom_call.1} parent=0
    _
  %s7 = ssub.s32 1, %s5
  %s8 = scalar_select 0, %s7, %s5
  $region1: #{tpu_custom_call.1} parent=0
    #allocation2 [shape = 'u8[4096]{0}', space=vmem, size = 0x1000, scoped, tag = 'input window, operand 0, single buffered']
    #allocation3 [shape = 's32[1]{0}', space=sflag, size = 0x4, scoped, tag = 'scoped memory for tpu_custom_call.1']
    #allocation4 [shape = 's32[1]{0}', space=sflag, size = 0x4, scoped, tag = 'scoped memory for tpu_custom_call.1']
    #allocation5 [shape = 'u8[135168]{0}', space=vmem, size = 0x21000, scoped, tag = 'input window, operand 1, single buffered']
    #allocation6 [shape = 's32[1]{0}', space=sflag, size = 0x4, scoped, tag = 'scoped memory for tpu_custom_call.1']
    #allocation7 [shape = 'u8[4096]{0}', space=vmem, size = 0x1000, scoped, tag = 'output window, operand 0, single buffered']
    #allocation8 [shape = 'u8[4096]{0}', space=vmem, size = 0x1000, scoped, tag = 'output window, operand 1, single buffered']
    #allocation9 [shape = 's32[1]{0}', space=sflag, size = 0x4, scoped, tag = 'scoped memory for tpu_custom_call.1']
    %9 = vsyncpa [#allocation3], 0
    %10 = vsyncpa [#allocation6], 0
    %11 = vsyncpa [#allocation4], 0
    %12 = vsyncpa [#allocation9], 0
    // Predicated region
    $region2: #{tpu_custom_call.1} parent=1 // pred_check
      _
    $region3: #{tpu_custom_call.1} parent=1 // pred_check_branch
      %14 = sbr.rel (0) target = $region5
    $region4: #{tpu_custom_call.1} parent=1 // pred_region
      %s16 = ssub.s32 128, 128
      %17 = vsyncadd [#allocation3], %s16
      %s19 = sshll.u32 [#allocation2], 4
      %s20 = int_to_ptr.vmem [resolvable:$true] %s19
      %22 = dma.hbm_to_vmem [thread:$0]  %s0, 128, %s20, [#allocation3]
    $region5: #{tpu_custom_call.1} parent=1 // pred_fallthru
      _
    // Predicated region
    $region6: #{tpu_custom_call.1} parent=1 // pred_check
      _
    $region7: #{tpu_custom_call.1} parent=1 // pred_check_branch
      %24 = sbr.rel (0) target = $region9
    $region8: #{tpu_custom_call.1} parent=1 // pred_region
      %s26 = ssub.s32 4224, 4224
      %27 = vsyncadd [#allocation6], %s26
      %s28 = sshll.u32 [#allocation5], 4
      %s29 = int_to_ptr.vmem [resolvable:$true] %s28
      %34 = dma.hbm_to_vmem [thread:$0]  %s1, 4224, %s29, [#allocation6], 128, 128, 8
    $region9: #{tpu_custom_call.1} parent=1 // pred_fallthru
      _
    // Predicated region
    $region10: #{tpu_custom_call.1} parent=1 // pred_check
      _
    $region11: #{tpu_custom_call.1} parent=1 // pred_check_branch
      %36 = sbr.rel (0) target = $region13
    $region12: #{tpu_custom_call.1} parent=1 // pred_region
      %37 = dma.done [#allocation3], 128
    $region13: #{tpu_custom_call.1} parent=1 // pred_fallthru
      _
    // Predicated region
    $region14: #{tpu_custom_call.1} parent=1 // pred_check
      _
    $region15: #{tpu_custom_call.1} parent=1 // pred_check_branch
      %39 = sbr.rel (0) target = $region17
    $region16: #{tpu_custom_call.1} parent=1 // pred_region
      %40 = dma.done [#allocation6], 4224
    $region17: #{tpu_custom_call.1} parent=1 // pred_fallthru
      _
    %v41 = vld [vmem:[#allocation2] sm:$0xff]
    %v42 = vld [vmem:[#allocation5] sm:$0xff]
    %v43 = vld [vmem:[#allocation5 + $0x8] sm:$0xff]
    %v44 = vld [vmem:[#allocation5 + $0x10] sm:$0xff]
    %v45 = vld [vmem:[#allocation5 + $0x18] sm:$0xff]
    %v46 = vld [vmem:[#allocation5 + $0x20] sm:$0xff]
    %v47 = vld [vmem:[#allocation5 + $0x28] sm:$0xff]
    %v48 = vld [vmem:[#allocation5 + $0x30] sm:$0xff]
    %v49 = vld [vmem:[#allocation5 + $0x38] sm:$0xff]
    %v50 = vld [vmem:[#allocation5 + $0x40] sm:$0xff]
    %v51 = vld [vmem:[#allocation5 + $0x48] sm:$0xff]
    %v52 = vld [vmem:[#allocation5 + $0x50] sm:$0xff]
    %v53 = vld [vmem:[#allocation5 + $0x58] sm:$0xff]
    %v54 = vld [vmem:[#allocation5 + $0x60] sm:$0xff]
    %v55 = vld [vmem:[#allocation5 + $0x68] sm:$0xff]
    %v56 = vld [vmem:[#allocation5 + $0x70] sm:$0xff]
    %v57 = vld [vmem:[#allocation5 + $0x78] sm:$0xff]
    %v58 = vld [vmem:[#allocation5 + $0x80] sm:$0xff]
    %v59 = vld [vmem:[#allocation5 + $0x88] sm:$0xff]
    %v60 = vld [vmem:[#allocation5 + $0x90] sm:$0xff]
    %v61 = vld [vmem:[#allocation5 + $0x98] sm:$0xff]
    %v62 = vld [vmem:[#allocation5 + $0xa0] sm:$0xff]
    %v63 = vld [vmem:[#allocation5 + $0xa8] sm:$0xff]
    %v64 = vld [vmem:[#allocation5 + $0xb0] sm:$0xff]
    %v65 = vld [vmem:[#allocation5 + $0xb8] sm:$0xff]
    %v66 = vld [vmem:[#allocation5 + $0xc0] sm:$0xff]
    %v67 = vld [vmem:[#allocation5 + $0xc8] sm:$0xff]
    %v68 = vld [vmem:[#allocation5 + $0xd0] sm:$0xff]
    %v69 = vld [vmem:[#allocation5 + $0xd8] sm:$0xff]
    %v70 = vld [vmem:[#allocation5 + $0xe0] sm:$0xff]
    %v71 = vld [vmem:[#allocation5 + $0xe8] sm:$0xff]
    %v72 = vld [vmem:[#allocation5 + $0xf0] sm:$0xff]
    %v73 = vld [vmem:[#allocation5 + $0xf8] sm:$0xff]
    %v74 = vld [vmem:[#allocation5 + $0x100] sm:$0xff]
    %vm75 = vcmask 64512
    %v77 = vsel %vm75, %v41, 0
    %79 = vmatprep.subr.mxu0 0.0
    %80 = vmatpush1.msra.mxu0 %v42
    %81 = vmatprep.subr.mxu0 0.0
    %82 = vmatpush1.msra.mxu0 0.0
    %83 = vmatprep.subr.mxu0 0.0
    %84 = vmatpush1.msra.mxu0 0.0
    %85 = vmatprep.subr.mxu0 0.0
    %86 = vmatpush1.msra.mxu0 0.0
    %87 = vmatprep.subr.mxu0 0.0
    %88 = vmatpush1.msra.mxu0 0.0
    %89 = vmatprep.subr.mxu0 0.0
    %90 = vmatpush1.msra.mxu0 0.0
    %91 = vmatprep.subr.mxu0 0.0
    %92 = vmatpush1.msra.mxu0 0.0
    %93 = vmatprep.subr.mxu0 0.0
    %94 = vmatpush1.msra.mxu0 0.0
    %95 = vmatprep.subr.mxu0 0.0
    %96 = vmatpush1.msra.mxu0 0.0
    %97 = vmatprep.subr.mxu0 0.0
    %98 = vmatpush1.msra.mxu0 0.0
    %99 = vmatprep.subr.mxu0 0.0
    %100 = vmatpush1.msra.mxu0 0.0
    %101 = vmatprep.subr.mxu0 0.0
    %102 = vmatpush1.msra.mxu0 0.0
    %103 = vmatprep.subr.mxu0 0.0
    %104 = vmatpush1.msra.mxu0 0.0
    %105 = vmatprep.subr.mxu0 0.0
    %106 = vmatpush1.msra.mxu0 0.0
    %107 = vmatprep.subr.mxu0 0.0
    %108 = vmatpush1.msra.mxu0 0.0
    %109 = vmatprep.subr.mxu0 0.0
    %110 = vmatpush1.msra.mxu0 0.0
    %111 = vmatprep.subr.mxu0 0.0
    %112 = vmatpush1.msra.mxu0 0.0
    %113 = vmatprep.subr.mxu0 0.0
    %114 = vmatpush1.msra.mxu0 0.0
    %115 = vmatprep.subr.mxu0 0.0
    %116 = vmatpush1.msra.mxu0 0.0
    %117 = vmatprep.subr.mxu0 0.0
    %118 = vmatpush1.msra.mxu0 0.0
    %119 = vmatprep.subr.mxu0 0.0
    %120 = vmatpush1.msra.mxu0 0.0
    %121 = vmatprep.subr.mxu0 0.0
    %122 = vmatpush1.msra.mxu0 0.0
    %123 = vmatprep.subr.mxu0 0.0
    %124 = vmatpush1.msra.mxu0 0.0
    %125 = vmatprep.subr.mxu0 0.0
    %126 = vmatpush1.msra.mxu0 0.0
    %127 = vmatprep.subr.mxu0 0.0
    %128 = vmatpush1.msra.mxu0 0.0
    %129 = vmatprep.subr.mxu0 0.0
    %130 = vmatpush1.msra.mxu0 0.0
    %131 = vmatprep.subr.mxu0 0.0
    %132 = vmatpush1.msra.mxu0 0.0
    %133 = vmatprep.subr.mxu0 0.0
    %134 = vmatpush1.msra.mxu0 0.0
    %135 = vmatprep.subr.mxu0 0.0
    %136 = vmatpush1.msra.mxu0 0.0
    %137 = vmatprep.subr.mxu0 0.0
    %138 = vmatpush1.msra.mxu0 0.0
    %139 = vmatprep.subr.mxu0 0.0
    %140 = vmatpush1.msra.mxu0 0.0
    %141 = vmatprep.subr.mxu0 0.0
    %142 = vmatpush1.msra.mxu0 0.0
    %143 = vmatprep.mubr.f32.mxu0 0.0
    %144 = vmatmul.mubr.f32.gmra.mrb[0].mxu0 %v77
    %v145 = vpop.f32.mrb[0].mxu0
    %v146 = vadd.f32 0.0, %v145
    %v147 = vpop.f32.mrb[0].mxu0
    %148 = vdwg.mxu0
    %v149 = vmax.f32 %v146, 0.0
    %150 = vmatprep.subr.mxu0 0.0
    %151 = vmatpush1.msra.mxu0 %v43
    %152 = vmatprep.subr.mxu0 0.0
    %153 = vmatpush1.msra.mxu0 %v44
    %154 = vmatprep.subr.mxu0 0.0
    %155 = vmatpush1.msra.mxu0 %v45
    %156 = vmatprep.subr.mxu0 0.0
    %157 = vmatpush1.msra.mxu0 %v46
    %158 = vmatprep.subr.mxu0 0.0
    %159 = vmatpush1.msra.mxu0 %v47
    %160 = vmatprep.subr.mxu0 0.0
    %161 = vmatpush1.msra.mxu0 %v48
    %162 = vmatprep.subr.mxu0 0.0
    %163 = vmatpush1.msra.mxu0 %v49
    %164 = vmatprep.subr.mxu0 0.0
    %165 = vmatpush1.msra.mxu0 %v50
    %166 = vmatprep.subr.mxu0 0.0
    %167 = vmatpush1.msra.mxu0 %v51
    %168 = vmatprep.subr.mxu0 0.0
    %169 = vmatpush1.msra.mxu0 %v52
    %170 = vmatprep.subr.mxu0 0.0
    %171 = vmatpush1.msra.mxu0 %v53
    %172 = vmatprep.subr.mxu0 0.0
    %173 = vmatpush1.msra.mxu0 %v54
    %174 = vmatprep.subr.mxu0 0.0
    %175 = vmatpush1.msra.mxu0 %v55
    %176 = vmatprep.subr.mxu0 0.0
    %177 = vmatpush1.msra.mxu0 %v56
    %178 = vmatprep.subr.mxu0 0.0
    %179 = vmatpush1.msra.mxu0 %v57
    %180 = vmatprep.subr.mxu0 0.0
    %181 = vmatpush1.msra.mxu0 %v58
    %182 = vmatprep.subr.mxu0 0.0
    %183 = vmatpush1.msra.mxu0 0.0
    %184 = vmatprep.subr.mxu0 0.0
    %185 = vmatpush1.msra.mxu0 0.0
    %186 = vmatprep.subr.mxu0 0.0
    %187 = vmatpush1.msra.mxu0 0.0
    %188 = vmatprep.subr.mxu0 0.0
    %189 = vmatpush1.msra.mxu0 0.0
    %190 = vmatprep.subr.mxu0 0.0
    %191 = vmatpush1.msra.mxu0 0.0
    %192 = vmatprep.subr.mxu0 0.0
    %193 = vmatpush1.msra.mxu0 0.0
    %194 = vmatprep.subr.mxu0 0.0
    %195 = vmatpush1.msra.mxu0 0.0
    %196 = vmatprep.subr.mxu0 0.0
    %197 = vmatpush1.msra.mxu0 0.0
    %198 = vmatprep.subr.mxu0 0.0
    %199 = vmatpush1.msra.mxu0 0.0
    %200 = vmatprep.subr.mxu0 0.0
    %201 = vmatpush1.msra.mxu0 0.0
    %202 = vmatprep.subr.mxu0 0.0
    %203 = vmatpush1.msra.mxu0 0.0
    %204 = vmatprep.subr.mxu0 0.0
    %205 = vmatpush1.msra.mxu0 0.0
    %206 = vmatprep.subr.mxu0 0.0
    %207 = vmatpush1.msra.mxu0 0.0
    %208 = vmatprep.subr.mxu0 0.0
    %209 = vmatpush1.msra.mxu0 0.0
    %210 = vmatprep.subr.mxu0 0.0
    %211 = vmatpush1.msra.mxu0 0.0
    %212 = vmatprep.subr.mxu0 0.0
    %213 = vmatpush1.msra.mxu0 0.0
    %214 = vmatprep.mubr.f32.mxu0 0.0
    %215 = vmatmul.mubr.f32.gmra.mrb[0].mxu0 %v149
    %v216 = vpop.f32.mrb[0].mxu0
    %v217 = vadd.f32 0.0, %v216
    %v218 = vpop.f32.mrb[0].mxu0
    %219 = vdwg.mxu0
    %v220 = vmax.f32 %v217, 0.0
    %221 = vmatprep.subr.mxu0 0.0
    %222 = vmatpush1.msra.mxu0 %v59
    %223 = vmatprep.subr.mxu0 0.0
    %224 = vmatpush1.msra.mxu0 %v60
    %225 = vmatprep.subr.mxu0 0.0
    %226 = vmatpush1.msra.mxu0 %v61
    %227 = vmatprep.subr.mxu0 0.0
    %228 = vmatpush1.msra.mxu0 %v62
    %229 = vmatprep.subr.mxu0 0.0
    %230 = vmatpush1.msra.mxu0 %v63
    %231 = vmatprep.subr.mxu0 0.0
    %232 = vmatpush1.msra.mxu0 %v64
    %233 = vmatprep.subr.mxu0 0.0
    %234 = vmatpush1.msra.mxu0 %v65
    %235 = vmatprep.subr.mxu0 0.0
    %236 = vmatpush1.msra.mxu0 %v66
    %237 = vmatprep.subr.mxu0 0.0
    %238 = vmatpush1.msra.mxu0 %v67
    %239 = vmatprep.subr.mxu0 0.0
    %240 = vmatpush1.msra.mxu0 %v68
    %241 = vmatprep.subr.mxu0 0.0
    %242 = vmatpush1.msra.mxu0 %v69
    %243 = vmatprep.subr.mxu0 0.0
    %244 = vmatpush1.msra.mxu0 %v70
    %245 = vmatprep.subr.mxu0 0.0
    %246 = vmatpush1.msra.mxu0 %v71
    %247 = vmatprep.subr.mxu0 0.0
    %248 = vmatpush1.msra.mxu0 %v72
    %249 = vmatprep.subr.mxu0 0.0
    %250 = vmatpush1.msra.mxu0 %v73
    %251 = vmatprep.subr.mxu0 0.0
    %252 = vmatpush1.msra.mxu0 %v74
    %253 = vmatprep.subr.mxu0 0.0
    %254 = vmatpush1.msra.mxu0 0.0
    %255 = vmatprep.subr.mxu0 0.0
    %256 = vmatpush1.msra.mxu0 0.0
    %257 = vmatprep.subr.mxu0 0.0
    %258 = vmatpush1.msra.mxu0 0.0
    %259 = vmatprep.subr.mxu0 0.0
    %260 = vmatpush1.msra.mxu0 0.0
    %261 = vmatprep.subr.mxu0 0.0
    %262 = vmatpush1.msra.mxu0 0.0
    %263 = vmatprep.subr.mxu0 0.0
    %264 = vmatpush1.msra.mxu0 0.0
    %265 = vmatprep.subr.mxu0 0.0
    %266 = vmatpush1.msra.mxu0 0.0
    %267 = vmatprep.subr.mxu0 0.0
    %268 = vmatpush1.msra.mxu0 0.0
    %269 = vmatprep.subr.mxu0 0.0
    %270 = vmatpush1.msra.mxu0 0.0
    %271 = vmatprep.subr.mxu0 0.0
    %272 = vmatpush1.msra.mxu0 0.0
    %273 = vmatprep.subr.mxu0 0.0
    %274 = vmatpush1.msra.mxu0 0.0
    %275 = vmatprep.subr.mxu0 0.0
    %276 = vmatpush1.msra.mxu0 0.0
    %277 = vmatprep.subr.mxu0 0.0
    %278 = vmatpush1.msra.mxu0 0.0
    %279 = vmatprep.subr.mxu0 0.0
    %280 = vmatpush1.msra.mxu0 0.0
    %281 = vmatprep.subr.mxu0 0.0
    %282 = vmatpush1.msra.mxu0 0.0
    %283 = vmatprep.subr.mxu0 0.0
    %284 = vmatpush1.msra.mxu0 0.0
    %285 = vmatprep.mubr.f32.mxu0 0.0
    %286 = vmatmul.mubr.f32.gmra.mrb[0].mxu0 %v220
    %v287 = vpop.f32.mrb[0].mxu0
    %v288 = vadd.f32 0.0, %v287
    %v289 = vpop.f32.mrb[0].mxu0
    %290 = vdwg.mxu0
    %291 = vst [vmem:[#allocation7] sm:$0xff] %v288
    %293 = vrot.lane.b32.xlu0 %v288, 1
    %v294 = vpop.permute.xlu0 %293
    %vm296 = vcmp.gt.f32.partialorder %v288, %v294
    %v297 = vsel %vm296, 1, 0
    %298 = vset.pattern.permute.xlu0 1
    %299 = vperm.xlu0 %298, %v297
    %v300 = vpop.permute.xlu0 %299
    %301 = vst [vmem:[#allocation8] sm:$0xff] %v300
    // Predicated region
    $region18: #{tpu_custom_call.1} parent=1 // pred_check
      _
    $region19: #{tpu_custom_call.1} parent=1 // pred_check_branch
      %303 = sbr.rel (0) target = $region21
    $region20: #{tpu_custom_call.1} parent=1 // pred_region
      %s305 = ssub.s32 128, 128
      %306 = vsyncadd [#allocation4], %s305
      %s308 = sshll.u32 [#allocation7], 4
      %s309 = int_to_ptr.vmem [resolvable:$true] %s308
      %311 = dma.vmem_to_hbm [thread:$0]  %s309, 128, %s2, [#allocation4]
    $region21: #{tpu_custom_call.1} parent=1 // pred_fallthru
      _
    // Predicated region
    $region22: #{tpu_custom_call.1} parent=1 // pred_check
      _
    $region23: #{tpu_custom_call.1} parent=1 // pred_check_branch
      %313 = sbr.rel (0) target = $region25
    $region24: #{tpu_custom_call.1} parent=1 // pred_region
      %s315 = ssub.s32 128, 128
      %316 = vsyncadd [#allocation9], %s315
      %s318 = sshll.u32 [#allocation8], 4
      %s319 = int_to_ptr.vmem [resolvable:$true] %s318
      %321 = dma.vmem_to_hbm [thread:$0]  %s319, 128, %s3, [#allocation9]
    $region25: #{tpu_custom_call.1} parent=1 // pred_fallthru
      _
    // Predicated region
    $region26: #{tpu_custom_call.1} parent=1 // pred_check
      _
    $region27: #{tpu_custom_call.1} parent=1 // pred_check_branch
      %323 = sbr.rel (0) target = $region29
    $region28: #{tpu_custom_call.1} parent=1 // pred_region
      %324 = dma.done [#allocation4], 128
    $region29: #{tpu_custom_call.1} parent=1 // pred_fallthru
      _
    // Predicated region
    $region30: #{tpu_custom_call.1} parent=1 // pred_check
      _
    $region31: #{tpu_custom_call.1} parent=1 // pred_check_branch
      %326 = sbr.rel (0) target = $region33
    $region32: #{tpu_custom_call.1} parent=1 // pred_region
      %327 = dma.done [#allocation9], 128
    $region33: #{tpu_custom_call.1} parent=1 // pred_fallthru
      _
    %328 = vsyncpa [#allocation3], 1
    %329 = vsyncpa [#allocation6], 1
    %330 = vsyncpa [#allocation4], 1
    %331 = vsyncpa [#allocation9], 1

</llo_original>
